<compile_context>
chip_gen: v7x
topology: tpu7x:2x2x1
jax: 0.10.0
libtpu: 0.0.40
codegen_flags: <defaults>
</compile_context>

<pallas_src>
import functools
import math

import numpy as np

import jax
import jax.numpy as jnp
from jax import lax
from jax.experimental import pallas as pl
from jax.experimental.pallas import tpu as pltpu


def _round_up(x, m):
    return ((x + m - 1) // m) * m


def _bipart_attn_kernel(n_heads, head_dim, points_per_graph, kv_tile, cdt,
                        x_ref, wqk_ref, sb_ref, wv_ref, wo_ref, bo_ref,
                        out_ref, m_sc, l_sc, acc_sc):
    """Grid = (graph b, kv tile t).

    Online-softmax attention of the shared, pre-projected aggregator queries
    against graph b's points only; the block-diagonal mask is structural, only
    zero-padded kv rows of the (possibly partial) last tile are masked.
    """
    t = pl.program_id(1)
    H, hd, P, Tk = n_heads, head_dim, points_per_graph, kv_tile
    R_pad = m_sc.shape[1]
    NEG = jnp.float32(-1e30)

    # dot_general patterns — no in-kernel transposes / broadcasts anywhere.
    nt2d = (((1,), (1,)), ((), ()))         # (M,K)   x (N,K)   -> (M,N)
    bmm_nt = (((2,), (2,)), ((0,), (0,)))   # (H,M,K) x (H,N,K) -> (H,M,N)
    bmm_nn = (((2,), (1,)), ((0,), (0,)))   # (H,M,K) x (H,K,N) -> (H,M,N)

    @pl.when(t == 0)
    def _init():
        m_sc[...] = jnp.full(m_sc.shape, NEG, jnp.float32)
        l_sc[...] = jnp.zeros(l_sc.shape, jnp.float32)
        acc_sc[...] = jnp.zeros(acc_sc.shape, jnp.float32)

    x = x_ref[...]                                            # (Tk, E) compute dtype

    # Scores: Q, 1/sqrt(hd) and the per-head K weights pre-folded into wqk;
    # bk pre-folded into sb.  One wide GEMM, N = Tk (lane dense), f32 result.
    s = lax.dot_general(wqk_ref[...], x, nt2d,
                        preferred_element_type=jnp.float32)   # (H*R_pad, Tk)
    s = s.reshape(H, R_pad, Tk) + sb_ref[...]                 # (H, R_pad, Tk)

    if P % Tk != 0:
        # Only zero-padded kv rows need masking (statically absent otherwise).
        kv_idx = t * Tk + lax.broadcasted_iota(jnp.int32, (1, 1, Tk), 2)
        s = s + jnp.where(kv_idx < P, jnp.float32(0.0), NEG)

    # V projection for all heads in ONE wide GEMM (bias folded into the output
    # bias); the reshape (E, Tk) -> (H, hd, Tk) is a sublane split.
    v = lax.dot_general(wv_ref[...], x, nt2d,
                        preferred_element_type=cdt)           # (E, Tk)
    v = v.reshape(H, hd, Tk)

    # Online softmax update; normalization deferred to the last tile.
    m_prev = m_sc[...]
    m_new = jnp.maximum(m_prev, jnp.max(s, axis=-1, keepdims=True))
    alpha = jnp.exp(m_prev - m_new)
    p = jnp.exp(s - m_new)                                    # (H, R_pad, Tk)
    l_sc[...] = alpha * l_sc[...] + jnp.sum(p, axis=-1, keepdims=True)
    acc_sc[...] = alpha * acc_sc[...] + lax.dot_general(
        p.astype(cdt), v, bmm_nt, preferred_element_type=jnp.float32)
    m_sc[...] = m_new

    @pl.when(t == pl.num_programs(1) - 1)
    def _finalize():
        # Exact divide (runs once per graph; approx=True would cap accuracy).
        o = acc_sc[...] * pl.reciprocal(l_sc[...], approx=False)   # (H, R_pad, hd)
        # Output projection summed over heads (== concat(heads) @ Wo^T); bv's
        # contribution and bo are both pre-folded into bo_ref.
        oh = lax.dot_general(o.astype(cdt), wo_ref[...], bmm_nn,
                             preferred_element_type=jnp.float32)   # (H, R_pad, E)
        out_ref[...] = (jnp.sum(oh, axis=0) + bo_ref[...]).astype(out_ref.dtype)


def bipart_pool_attn(x_pad, wqk2, sb3, wv2, wo3, bo_tot, *, n_heads, head_dim,
                     ratio_pad, points_per_graph, kv_tile, batch_size,
                     compute_dtype=jnp.float32,
                     vmem_limit_bytes=48 * 1024 * 1024):
    E = x_pad.shape[1]
    P_pad = x_pad.shape[0] // batch_size
    kt = P_pad // kv_tile

    kernel = functools.partial(_bipart_attn_kernel, n_heads, head_dim,
                               points_per_graph, kv_tile, compute_dtype)

    def const(arr):
        # Constant (weight/bias) operand: same block every grid step.
        # TODO(synk): pipeline_mode=pl.Buffered(1) on these would drop the
        # redundant second VMEM buffer (useful on v7x's 64 MiB VMEM).
        return pl.BlockSpec(arr.shape, lambda b, t, _nd=arr.ndim: (0,) * _nd)

    return pl.pallas_call(
        kernel,
        out_shape=jax.ShapeDtypeStruct((batch_size * ratio_pad, E), jnp.float32),
        grid=(batch_size, kt),
        in_specs=[
            # graph b's kv tile t of the point cloud
            pl.BlockSpec((kv_tile, E), lambda b, t: (b * kt + t, 0)),
            const(wqk2), const(sb3), const(wv2), const(wo3), const(bo_tot),
        ],
        out_specs=pl.BlockSpec((ratio_pad, E), lambda b, t: (b, 0)),
        scratch_shapes=[
            pltpu.VMEM((n_heads, ratio_pad, 1), jnp.float32),         # running max
            pltpu.VMEM((n_heads, ratio_pad, 1), jnp.float32),         # running sum
            pltpu.VMEM((n_heads, ratio_pad, head_dim), jnp.float32),  # un-normalized acc
        ],
        compiler_params=pltpu.CompilerParams(
            dimension_semantics=("parallel", "arbitrary"),
            vmem_limit_bytes=vmem_limit_bytes),
    )(x_pad, wqk2, sb3, wv2, wo3, bo_tot)


class BipartPoolAttn:
    """JAX/Pallas port of BipartPool(mode='attn') forward."""

    def __init__(self, *, in_channels, ratio, n_heads, batch_size, key,
                 compute_dtype=jnp.float32, max_kv_tile=1024,
                 vmem_limit_bytes=48 * 1024 * 1024):
        self.in_channels = in_channels
        self.ratio = ratio
        self.n_heads = n_heads
        self.batch_size = batch_size
        self.compute_dtype = compute_dtype
        self.max_kv_tile = max_kv_tile
        self.vmem_limit_bytes = vmem_limit_bytes
        E = in_channels * n_heads
        hd = E // n_heads
        self.E, self.head_dim = E, hd

        ks = jax.random.split(key, 6)
        # aggrs ~ N(0,1) like torch.normal(0, 1, ...)
        self.aggrs = jax.random.normal(ks[0], (ratio, E), jnp.float32)
        # MultiheadAttention params (synthetic deterministic init)
        in_proj_w = jax.random.normal(ks[1], (3 * E, E), jnp.float32) * 0.1
        in_proj_b = jax.random.normal(ks[2], (3 * E,), jnp.float32) * 0.1
        self.wq, self.wk, self.wv = (in_proj_w[:E], in_proj_w[E:2 * E],
                                     in_proj_w[2 * E:])
        self.bq = in_proj_b[:E].reshape(1, E)
        self.bk = in_proj_b[E:2 * E].reshape(1, E)
        self.bv = in_proj_b[2 * E:].reshape(1, E)
        self.wo = jax.random.normal(ks[3], (E, E), jnp.float32) * 0.1
        self.bo = (jax.random.normal(ks[4], (E,), jnp.float32) * 0.1).reshape(1, E)

        # mask buffer kept only for parity with the torch module / reference;
        # the kernel exploits its block-diagonal structure instead of reading it.
        eye = jnp.eye(batch_size, dtype=bool)
        self.mask = ~jnp.repeat(eye, ratio, axis=1)
        self.batchcent = jnp.arange(batch_size, dtype=jnp.int32)

        # ---- kernel-friendly fused / folded parameters (computed ONCE) ----
        R, H = ratio, n_heads
        self.ratio_pad = _round_up(R, 8)
        rp = self.ratio_pad
        # Pre-scaled queries (graph-independent): (R, E) -> (H, R, hd).
        q = (self.aggrs @ self.wq.T + self.bq) / math.sqrt(hd)
        q3 = q.reshape(R, H, hd).transpose(1, 0, 2)                  # (H, R, hd)
        wk3 = self.wk.reshape(H, hd, E)                              # (H, hd, E)
        # Q folded into the K weights:  s = wqk @ x^T  (+ sb).
        wqk = jnp.einsum('hrd,hde->hre', q3, wk3)                    # (H, R, E)
        wqk = jnp.pad(wqk, ((0, 0), (0, rp - R), (0, 0)))
        self.wqk2 = wqk.reshape(H * rp, E).astype(compute_dtype)
        sb = jnp.einsum('hrd,hd->hr', q3, self.bk.reshape(H, hd))    # (H, R)
        self.sb3 = jnp.pad(sb, ((0, 0), (0, rp - R)))[..., None]     # (H, R_pad, 1) f32
        # V projection weight, all heads at once (torch row layout already).
        self.wv2 = self.wv.astype(compute_dtype)                     # (E, E)
        # Output projection per head: concat(heads) @ Wo^T == sum_h o_h @ wo3[h].
        self.wo3 = (self.wo.reshape(E, H, hd).transpose(1, 2, 0)
                    .astype(compute_dtype))                          # (H, hd, E)
        # bv flows through Wo with weight 1 (softmax rows sum to 1) -> fold it
        # into the output bias.
        self.bo_tot = self.bo + self.bv @ self.wo.T                  # (1, E) f32

    def __call__(self, x, edge_index, batch):
        B, R, E, H = self.batch_size, self.ratio, self.E, self.n_heads
        n_features = x.shape[-1]
        assert n_features == E, \
            "BipartPool(attn) requires n_features == in_channels * n_heads"
        x_large = x.reshape(-1, E)
        N = x_large.shape[0]
        assert N % B == 0
        P = N // B
        # TODO(synk): the kernel assumes points are stored contiguously per
        # graph with a fixed per-graph count (batch == repeat(arange(B), P),
        # which is how this module is fed); ragged/permuted `batch` would need
        # a scalar-prefetch offset table.
        itemsize = np.dtype(self.compute_dtype).itemsize
        row_align = 8 * max(1, 4 // itemsize)        # 8 f32 / 16 bf16
        kv_tile = min(self.max_kv_tile, _round_up(P, row_align))
        kv_tile = _round_up(kv_tile, row_align)
        P_pad = _round_up(P, kv_tile)
        x_pad = jnp.pad(x_large.reshape(B, P, E),
                        ((0, 0), (0, P_pad - P), (0, 0)))
        x_pad = x_pad.reshape(B * P_pad, E).astype(self.compute_dtype)

        out = bipart_pool_attn(
            x_pad, self.wqk2, self.sb3, self.wv2, self.wo3, self.bo_tot,
            n_heads=H, head_dim=self.head_dim, ratio_pad=self.ratio_pad,
            points_per_graph=P, kv_tile=kv_tile, batch_size=B,
            compute_dtype=self.compute_dtype,
            vmem_limit_bytes=self.vmem_limit_bytes)

        xcent = out.reshape(B, self.ratio_pad, E)[:, :R, :]
        return (xcent.reshape(B, R, n_features),
                None, None,
                jnp.repeat(self.batchcent, R),
                None, None)


def _reference_attn(mod, x, batch):
    """Pure-JAX reference of torch.nn.MultiheadAttention (unbatched path)."""
    E, H = mod.E, mod.n_heads
    hd = E // H
    x_large = x.reshape(-1, E)
    x_aggrs = jnp.tile(mod.aggrs, (mod.batch_size, 1))
    mask = mod.mask[batch].T
    q = x_aggrs @ mod.wq.T + mod.bq
    k = x_large @ mod.wk.T + mod.bk
    v = x_large @ mod.wv.T + mod.bv
    outs = []
    for h in range(H):
        qh = q[:, h * hd:(h + 1) * hd] / jnp.sqrt(hd)
        kh = k[:, h * hd:(h + 1) * hd]
        vh = v[:, h * hd:(h + 1) * hd]
        s = qh @ kh.T
        s = jnp.where(mask, -jnp.inf, s)
        p = jax.nn.softmax(s, axis=-1)
        outs.append(p @ vh)
    attn = jnp.concatenate(outs, axis=-1)
    return (attn @ mod.wo.T + mod.bo).reshape(mod.batch_size, mod.ratio, E)


if __name__ == "__main__":
    # Small deterministic config; points_per_graph is deliberately not a
    # multiple of the kv tile so the padding-mask path is exercised.
    batch_size = 2
    points_per_graph = 12
    in_channels = 8
    n_heads = 2
    ratio = 4
    E = in_channels * n_heads  # n_features == embed_dim

    key = jax.random.PRNGKey(0)
    k_x, k_mod = jax.random.split(key)

    N = batch_size * points_per_graph
    x = jax.random.normal(k_x, (N, E), jnp.float32)
    batch = jnp.repeat(jnp.arange(batch_size, dtype=jnp.int32), points_per_graph)
    edge_index = jnp.zeros((2, 1), jnp.int32)  # unused in 'attn' mode

    # f32, default tiling (single padded kv tile per graph)
    mod = BipartPoolAttn(in_channels=in_channels, ratio=ratio,
                         n_heads=n_heads, batch_size=batch_size, key=k_mod)
    out = mod(x, edge_index, batch)
    xcent = jax.block_until_ready(out[0])
    ref = _reference_attn(mod, x, batch)
    assert xcent.shape == (batch_size, ratio, E)
    assert out[3].shape == (batch_size * ratio,)
    assert jnp.allclose(xcent, ref, atol=2e-3, rtol=2e-3)

    # f32, forced tiny kv tile -> multi-tile online softmax + partial last tile
    mod_mt = BipartPoolAttn(in_channels=in_channels, ratio=ratio,
                            n_heads=n_heads, batch_size=batch_size, key=k_mod,
                            max_kv_tile=8)
    xcent_mt = jax.block_until_ready(mod_mt(x, edge_index, batch)[0])
    assert jnp.allclose(xcent_mt, ref, atol=2e-3, rtol=2e-3)

    # bf16 MXU-operand fast path (f32 softmax & accumulation), looser tolerance
    mod_bf16 = BipartPoolAttn(in_channels=in_channels, ratio=ratio,
                              n_heads=n_heads, batch_size=batch_size, key=k_mod,
                              compute_dtype=jnp.bfloat16, max_kv_tile=16)
    xcent_bf16 = jax.block_until_ready(mod_bf16(x, edge_index, batch)[0])
    assert jnp.allclose(xcent_bf16, ref, atol=1e-1, rtol=1e-1)

    print("KERNEL_OK")
</pallas_src>

<mosaic_0001>
module attributes {stable_mosaic.version = 11 : i64} {
  func.func @_bipart_attn_kernel(%arg0: i32, %arg1: i32, %arg2: memref<16x16xf32, #tpu.memory_space<vmem>>, %arg3: memref<16x16xf32, #tpu.memory_space<vmem>>, %arg4: memref<2x8x1xf32, #tpu.memory_space<vmem>>, %arg5: memref<16x16xf32, #tpu.memory_space<vmem>>, %arg6: memref<2x8x16xf32, #tpu.memory_space<vmem>>, %arg7: memref<1x16xf32, #tpu.memory_space<vmem>>, %arg8: memref<8x16xf32, #tpu.memory_space<vmem>>, %arg9: memref<2x8x1xf32, #tpu.memory_space<vmem>>, %arg10: memref<2x8x1xf32, #tpu.memory_space<vmem>>, %arg11: memref<2x8x8xf32, #tpu.memory_space<vmem>>) attributes {dimension_semantics = [#tpu.dimension_semantics<parallel>, #tpu.dimension_semantics<arbitrary>], iteration_bounds = array<i64: 2, 1>, scalar_prefetch = 0 : i64, scratch_operands = 3 : i64, tpu.core_type = #tpu.core_type<tc>, window_params = [{transform_indices = @transform_0, window_bounds = array<i64: 16, 16>}, {pipeline_mode = #tpu.pipeline_mode<synchronous>, transform_indices = @transform_1, window_bounds = array<i64: 16, 16>}, {pipeline_mode = #tpu.pipeline_mode<synchronous>, transform_indices = @transform_2, window_bounds = array<i64: 2, 8, 1>}, {pipeline_mode = #tpu.pipeline_mode<synchronous>, transform_indices = @transform_3, window_bounds = array<i64: 16, 16>}, {pipeline_mode = #tpu.pipeline_mode<synchronous>, transform_indices = @transform_4, window_bounds = array<i64: 2, 8, 16>}, {pipeline_mode = #tpu.pipeline_mode<synchronous>, transform_indices = @transform_5, window_bounds = array<i64: 1, 16>}, {transform_indices = @transform_6, window_bounds = array<i64: 8, 16>}]} {
    %c0_i32 = arith.constant 0 : i32
    %0 = arith.cmpi eq, %arg1, %c0_i32 : i32
    %1 = arith.extui %0 : i1 to i32
    %cst = arith.constant -1.000000e+30 : f32
    %c0_i32_0 = arith.constant 0 : i32
    %2 = arith.cmpi ne, %1, %c0_i32_0 : i32
    scf.if %2 {
      %49 = vector.broadcast %cst : f32 to vector<2x8x1xf32>
      %c0_36 = arith.constant 0 : index
      %c0_37 = arith.constant 0 : index
      %c0_38 = arith.constant 0 : index
      %50 = vector.load %arg9[%c0_36, %c0_37, %c0_38] : memref<2x8x1xf32, #tpu.memory_space<vmem>>, vector<2x8x1xf32>
      tpu.vector_store %arg9[%c0_36, %c0_37, %c0_38], %49 {strides = array<i32>} : memref<2x8x1xf32, #tpu.memory_space<vmem>>, vector<2x8x1xf32>,
      %cst_39 = arith.constant 0.000000e+00 : f32
      %51 = vector.broadcast %cst_39 : f32 to vector<2x8x1xf32>
      %c0_40 = arith.constant 0 : index
      %c0_41 = arith.constant 0 : index
      %c0_42 = arith.constant 0 : index
      %52 = vector.load %arg10[%c0_40, %c0_41, %c0_42] : memref<2x8x1xf32, #tpu.memory_space<vmem>>, vector<2x8x1xf32>
      tpu.vector_store %arg10[%c0_40, %c0_41, %c0_42], %51 {strides = array<i32>} : memref<2x8x1xf32, #tpu.memory_space<vmem>>, vector<2x8x1xf32>,
      %cst_43 = arith.constant 0.000000e+00 : f32
      %53 = vector.broadcast %cst_43 : f32 to vector<2x8x8xf32>
      %c0_44 = arith.constant 0 : index
      %c0_45 = arith.constant 0 : index
      %c0_46 = arith.constant 0 : index
      %54 = vector.load %arg11[%c0_44, %c0_45, %c0_46] : memref<2x8x8xf32, #tpu.memory_space<vmem>>, vector<2x8x8xf32>
      tpu.vector_store %arg11[%c0_44, %c0_45, %c0_46], %53 {strides = array<i32>} : memref<2x8x8xf32, #tpu.memory_space<vmem>>, vector<2x8x8xf32>,
    } else {
    }
    %c0 = arith.constant 0 : index
    %c0_1 = arith.constant 0 : index
    %3 = vector.load %arg2[%c0, %c0_1] : memref<16x16xf32, #tpu.memory_space<vmem>>, vector<16x16xf32>
    %c0_2 = arith.constant 0 : index
    %c0_3 = arith.constant 0 : index
    %4 = vector.load %arg3[%c0_2, %c0_3] : memref<16x16xf32, #tpu.memory_space<vmem>>, vector<16x16xf32>
    %cst_4 = arith.constant dense<0.000000e+00> : vector<16x16xf32>
    %5 = tpu.matmul %4, %3, %cst_4 {dimension_numbers = #tpu.dot_dimension_numbers<[1], [1], [0], [0], [0, 0, 1, 0], [], []>} : vector<16x16xf32>, vector<16x16xf32>, vector<16x16xf32> -> vector<16x16xf32>
    %6 = vector.shape_cast %5 : vector<16x16xf32> to vector<2x8x16xf32>
    %c0_5 = arith.constant 0 : index
    %c0_6 = arith.constant 0 : index
    %c0_7 = arith.constant 0 : index
    %7 = vector.load %arg4[%c0_5, %c0_6, %c0_7] : memref<2x8x1xf32, #tpu.memory_space<vmem>>, vector<2x8x1xf32>
    %8 = vector.broadcast %7 : vector<2x8x1xf32> to vector<2x8x16xf32>
    %9 = arith.addf %6, %8 : vector<2x8x16xf32>
    %c16_i32 = arith.constant 16 : i32
    %10 = arith.muli %arg1, %c16_i32 : i32
    %11 = tpu.iota {dimensions = array<i32: 2>} : vector<1x1x16xi32>
    %12 = vector.broadcast %10 : i32 to vector<1x1x16xi32>
    %13 = arith.addi %12, %11 : vector<1x1x16xi32>
    %c12_i32 = arith.constant 12 : i32
    %14 = vector.broadcast %c12_i32 : i32 to vector<1x1x16xi32>
    %15 = arith.cmpi slt, %13, %14 : vector<1x1x16xi32>
    %cst_8 = arith.constant 0.000000e+00 : f32
    %cst_9 = arith.constant -1.000000e+30 : f32
    %16 = vector.broadcast %cst_8 : f32 to vector<1x1x16xf32>
    %17 = vector.broadcast %cst_9 : f32 to vector<1x1x16xf32>
    %18 = arith.select %15, %16, %17 : vector<1x1x16xi1>, vector<1x1x16xf32>
    %19 = vector.broadcast %18 : vector<1x1x16xf32> to vector<2x8x16xf32>
    %20 = arith.addf %9, %19 : vector<2x8x16xf32>
    %c0_10 = arith.constant 0 : index
    %c0_11 = arith.constant 0 : index
    %21 = vector.load %arg5[%c0_10, %c0_11] : memref<16x16xf32, #tpu.memory_space<vmem>>, vector<16x16xf32>
    %cst_12 = arith.constant dense<0.000000e+00> : vector<16x16xf32>
    %22 = tpu.matmul %21, %3, %cst_12 {dimension_numbers = #tpu.dot_dimension_numbers<[1], [1], [0], [0], [0, 0, 1, 0], [], []>} : vector<16x16xf32>, vector<16x16xf32>, vector<16x16xf32> -> vector<16x16xf32>
    %23 = vector.shape_cast %22 : vector<16x16xf32> to vector<2x8x16xf32>
    %c0_13 = arith.constant 0 : index
    %c0_14 = arith.constant 0 : index
    %c0_15 = arith.constant 0 : index
    %24 = vector.load %arg9[%c0_13, %c0_14, %c0_15] : memref<2x8x1xf32, #tpu.memory_space<vmem>>, vector<2x8x1xf32>
    %cst_16 = arith.constant dense<0xFF800000> : vector<2x8xf32>
    %25 = vector.multi_reduction <maximumf>, %20, %cst_16 [2] : vector<2x8x16xf32> to vector<2x8xf32>
    %26 = vector.shape_cast %25 : vector<2x8xf32> to vector<2x8x1xf32>
    %27 = arith.maximumf %24, %26 : vector<2x8x1xf32>
    %28 = arith.subf %24, %27 : vector<2x8x1xf32>
    %29 = math.exp %28 : vector<2x8x1xf32>
    %30 = vector.broadcast %27 : vector<2x8x1xf32> to vector<2x8x16xf32>
    %31 = arith.subf %20, %30 : vector<2x8x16xf32>
    %32 = math.exp %31 : vector<2x8x16xf32>
    %c0_17 = arith.constant 0 : index
    %c0_18 = arith.constant 0 : index
    %c0_19 = arith.constant 0 : index
    %33 = vector.load %arg10[%c0_17, %c0_18, %c0_19] : memref<2x8x1xf32, #tpu.memory_space<vmem>>, vector<2x8x1xf32>
    %34 = arith.mulf %29, %33 : vector<2x8x1xf32>
    %cst_20 = arith.constant dense<0.000000e+00> : vector<2x8xf32>
    %35 = vector.multi_reduction <add>, %32, %cst_20 [2] : vector<2x8x16xf32> to vector<2x8xf32>
    %36 = vector.shape_cast %35 : vector<2x8xf32> to vector<2x8x1xf32>
    %37 = arith.addf %34, %36 : vector<2x8x1xf32>
    %c0_21 = arith.constant 0 : index
    %c0_22 = arith.constant 0 : index
    %c0_23 = arith.constant 0 : index
    %38 = vector.load %arg10[%c0_21, %c0_22, %c0_23] : memref<2x8x1xf32, #tpu.memory_space<vmem>>, vector<2x8x1xf32>
    tpu.vector_store %arg10[%c0_21, %c0_22, %c0_23], %37 {strides = array<i32>} : memref<2x8x1xf32, #tpu.memory_space<vmem>>, vector<2x8x1xf32>,
    %c0_24 = arith.constant 0 : index
    %c0_25 = arith.constant 0 : index
    %c0_26 = arith.constant 0 : index
    %39 = vector.load %arg11[%c0_24, %c0_25, %c0_26] : memref<2x8x8xf32, #tpu.memory_space<vmem>>, vector<2x8x8xf32>
    %40 = vector.broadcast %29 : vector<2x8x1xf32> to vector<2x8x8xf32>
    %41 = arith.mulf %40, %39 : vector<2x8x8xf32>
    %cst_27 = arith.constant dense<0.000000e+00> : vector<2x8x8xf32>
    %42 = tpu.matmul %32, %23, %cst_27 {dimension_numbers = #tpu.dot_dimension_numbers<[2], [2], [1], [1], [0, 0, 0, 1, 1, 1], [0], [0]>} : vector<2x8x16xf32>, vector<2x8x16xf32>, vector<2x8x8xf32> -> vector<2x8x8xf32>
    %43 = arith.addf %41, %42 : vector<2x8x8xf32>
    %c0_28 = arith.constant 0 : index
    %c0_29 = arith.constant 0 : index
    %c0_30 = arith.constant 0 : index
    %44 = vector.load %arg11[%c0_28, %c0_29, %c0_30] : memref<2x8x8xf32, #tpu.memory_space<vmem>>, vector<2x8x8xf32>
    tpu.vector_store %arg11[%c0_28, %c0_29, %c0_30], %43 {strides = array<i32>} : memref<2x8x8xf32, #tpu.memory_space<vmem>>, vector<2x8x8xf32>,
    %c0_31 = arith.constant 0 : index
    %c0_32 = arith.constant 0 : index
    %c0_33 = arith.constant 0 : index
    %45 = vector.load %arg9[%c0_31, %c0_32, %c0_33] : memref<2x8x1xf32, #tpu.memory_space<vmem>>, vector<2x8x1xf32>
    tpu.vector_store %arg9[%c0_31, %c0_32, %c0_33], %27 {strides = array<i32>} : memref<2x8x1xf32, #tpu.memory_space<vmem>>, vector<2x8x1xf32>,
    %c0_i32_34 = arith.constant 0 : i32
    %46 = arith.cmpi eq, %arg1, %c0_i32_34 : i32
    %47 = arith.extui %46 : i1 to i32
    %c0_i32_35 = arith.constant 0 : i32
    %48 = arith.cmpi ne, %47, %c0_i32_35 : i32
    scf.if %48 {
      %c0_36 = arith.constant 0 : index
      %c0_37 = arith.constant 0 : index
      %c0_38 = arith.constant 0 : index
      %49 = vector.load %arg11[%c0_36, %c0_37, %c0_38] : memref<2x8x8xf32, #tpu.memory_space<vmem>>, vector<2x8x8xf32>
      %c0_39 = arith.constant 0 : index
      %c0_40 = arith.constant 0 : index
      %c0_41 = arith.constant 0 : index
      %50 = vector.load %arg10[%c0_39, %c0_40, %c0_41] : memref<2x8x1xf32, #tpu.memory_space<vmem>>, vector<2x8x1xf32>
      %51 = tpu.reciprocal %50 : vector<2x8x1xf32> -> vector<2x8x1xf32>
      %52 = vector.broadcast %51 : vector<2x8x1xf32> to vector<2x8x8xf32>
      %53 = arith.mulf %49, %52 : vector<2x8x8xf32>
      %c0_42 = arith.constant 0 : index
      %c0_43 = arith.constant 0 : index
      %c0_44 = arith.constant 0 : index
      %54 = vector.load %arg6[%c0_42, %c0_43, %c0_44] : memref<2x8x16xf32, #tpu.memory_space<vmem>>, vector<2x8x16xf32>
      %cst_45 = arith.constant dense<0.000000e+00> : vector<2x8x16xf32>
      %55 = tpu.matmul %53, %54, %cst_45 {dimension_numbers = #tpu.dot_dimension_numbers<[2], [1], [1], [2], [0, 0, 0, 1, 1, 2], [0], [0]>} : vector<2x8x8xf32>, vector<2x8x16xf32>, vector<2x8x16xf32> -> vector<2x8x16xf32>
      %cst_46 = arith.constant dense<0.000000e+00> : vector<8x16xf32>
      %56 = vector.multi_reduction <add>, %55, %cst_46 [0] : vector<2x8x16xf32> to vector<8x16xf32>
      %c0_47 = arith.constant 0 : index
      %c0_48 = arith.constant 0 : index
      %57 = vector.load %arg7[%c0_47, %c0_48] : memref<1x16xf32, #tpu.memory_space<vmem>>, vector<1x16xf32>
      %58 = vector.broadcast %57 : vector<1x16xf32> to vector<8x16xf32>
      %59 = arith.addf %56, %58 : vector<8x16xf32>
      %c0_49 = arith.constant 0 : index
      %c0_50 = arith.constant 0 : index
      %60 = vector.load %arg8[%c0_49, %c0_50] : memref<8x16xf32, #tpu.memory_space<vmem>>, vector<8x16xf32>
      tpu.vector_store %arg8[%c0_49, %c0_50], %59 {strides = array<i32>} : memref<8x16xf32, #tpu.memory_space<vmem>>, vector<8x16xf32>,
    } else {
    }
    return
  }
  func.func @transform_0(%arg0: i32, %arg1: i32) -> (i32, i32) {
    %c1_i32 = arith.constant 1 : i32
    %0 = arith.muli %arg0, %c1_i32 : i32
    %1 = arith.addi %0, %arg1 : i32
    %c0_i32 = arith.constant 0 : i32
    %c0_i32_0 = arith.constant 0 : i32
    return %1, %c0_i32 : i32, i32
  }
  func.func @transform_1(%arg0: i32, %arg1: i32) -> (i32, i32) {
    %c0_i32 = arith.constant 0 : i32
    %c0_i32_0 = arith.constant 0 : i32
    %c0_i32_1 = arith.constant 0 : i32
    return %c0_i32, %c0_i32_0 : i32, i32
  }
  func.func @transform_2(%arg0: i32, %arg1: i32) -> (i32, i32, i32) {
    %c0_i32 = arith.constant 0 : i32
    %c0_i32_0 = arith.constant 0 : i32
    %c0_i32_1 = arith.constant 0 : i32
    %c0_i32_2 = arith.constant 0 : i32
    return %c0_i32, %c0_i32_0, %c0_i32_1 : i32, i32, i32
  }
  func.func @transform_3(%arg0: i32, %arg1: i32) -> (i32, i32) {
    %c0_i32 = arith.constant 0 : i32
    %c0_i32_0 = arith.constant 0 : i32
    %c0_i32_1 = arith.constant 0 : i32
    return %c0_i32, %c0_i32_0 : i32, i32
  }
  func.func @transform_4(%arg0: i32, %arg1: i32) -> (i32, i32, i32) {
    %c0_i32 = arith.constant 0 : i32
    %c0_i32_0 = arith.constant 0 : i32
    %c0_i32_1 = arith.constant 0 : i32
    %c0_i32_2 = arith.constant 0 : i32
    return %c0_i32, %c0_i32_0, %c0_i32_1 : i32, i32, i32
  }
  func.func @transform_5(%arg0: i32, %arg1: i32) -> (i32, i32) {
    %c0_i32 = arith.constant 0 : i32
    %c0_i32_0 = arith.constant 0 : i32
    %c0_i32_1 = arith.constant 0 : i32
    return %c0_i32, %c0_i32_0 : i32, i32
  }
  func.func @transform_6(%arg0: i32, %arg1: i32) -> (i32, i32) {
    %c0_i32 = arith.constant 0 : i32
    %c0_i32_0 = arith.constant 0 : i32
    return %arg0, %c0_i32 : i32, i32
  }
}

</mosaic_0001>

<llo_original>
// kernel: tpu_custom_call.1
$region0: #{tpu_custom_call.1}
  #allocation0 [shape = 'u32[]', space=smem, size = 0x4, offset = 0x4, fixed_abs, tag = 'smem constant byte address 0x4 - core index']
  #allocation1 [shape = 'u32[144,128]{1,0:T(1,128)}', space=vmem, size = 0x12000, scoped, tag = 'internal scratch']
  #allocation2 [shape = 'f32[2,8,1]{2,1,0:T(8,128)}', space=vmem, size = 0x2000, scoped, tag = 'scratch operand']
  #allocation3 [shape = 'f32[2,8,1]{2,1,0:T(8,128)}', space=vmem, size = 0x2000, scoped, tag = 'scratch operand']
  #allocation4 [shape = 'f32[2,8,8]{2,1,0:T(8,128)}', space=vmem, size = 0x2000, scoped, tag = 'scratch operand']
  %s0 = inlined_call_operand.vmem [shape: f32[32,16], index: 0, kind: input, shape index: {}]
  %s1 = inlined_call_operand.vmem [shape: f32[16,16], index: 1, kind: input, shape index: {}]
  %s2 = inlined_call_operand.vmem [shape: f32[2,8,1], index: 2, kind: input, shape index: {}]
  %s3 = inlined_call_operand.vmem [shape: f32[16,16], index: 3, kind: input, shape index: {}]
  %s4 = inlined_call_operand.vmem [shape: f32[2,8,16], index: 4, kind: input, shape index: {}]
  %s5 = inlined_call_operand.vmem [shape: f32[1,16], index: 5, kind: input, shape index: {}]
  %s6 = inlined_call_operand.hbm [shape: f32[16,16], index: 6, kind: output, shape index: {}]
  %s7 = sld [smem:[#allocation0]]
  $region65: #{tpu_custom_call.1} parent=0
    _
  %s9 = ssub.s32 1, %s7
  %s10 = scalar_select 0, %s9, %s7
  $region1: #{tpu_custom_call.1} parent=0
    #allocation5 [shape = 'u8[8192]{0}', space=vmem, size = 0x2000, scoped, tag = 'output window, operand 0']
    #allocation6 [shape = 's32[2]{0}', space=sflag, size = 0x8, scoped, tag = 'scoped memory for tpu_custom_call.1']
    %11 = vsyncpa [#allocation6], 0
    %s12 = scalar_lea.sflag [#allocation6], 1
    %13 = vsyncpa %s12, 0
    loop: start=0, step=1, limit=4
    $region2: #{tpu_custom_call.1} parent=1 // loop_pre_header
      _
    $region3: #{tpu_custom_call.1} parent=1 // loop_header
      %s15 = sphi 0, %s19
      %p16 = scmp.ge.s32.totalorder %s15, 4
      %s22 = sphi 0, %s34
      %s23 = sphi 0, %s30
      %s24 = sphi 0, %s22
      %s25 = sphi 0, %s23
      %s26 = sphi 0, %s24
      %s27 = sphi 0, %s25
      %s39 = sphi 0, %s41
      %s42 = sphi 0, %s39
      %s43 = sphi 0, %s42
      %s59 = sphi 0, %s43
      %s63 = sphi 0, %s63
      %s65 = sphi 0, %s63
      %s66 = sphi 0, %s65
      %s80 = sphi 0, %s66
      %s84 = sphi 0, %s84
      %s86 = sphi 0, %s84
      %s87 = sphi 0, %s86
      %s101 = sphi 0, %s87
      %s105 = sphi 0, %s105
      %s107 = sphi 0, %s105
      %s108 = sphi 0, %s107
      %s122 = sphi 0, %s108
      %s126 = sphi 0, %s126
      %s128 = sphi 0, %s126
      %s129 = sphi 0, %s128
      %s143 = sphi 0, %s129
      %s147 = sphi 0, %s147
      %s149 = sphi 0, %s147
      %s150 = sphi 0, %s149
      %s164 = sphi 0, %s150
      %s170 = sphi 0, %s172
      %s173 = sphi 0, %s170
      %s174 = sphi 0, %s173
      %s190 = sphi 0, %s174
    $region4: #{tpu_custom_call.1} parent=1 // loop_header_branch
      %18 = sbr.rel (%p16) target = $region8
    $region5: #{tpu_custom_call.1} parent=1 // loop_body
      %s20 = ssub.s32 %s15, 1
      %s21 = ssub.s32 %s15, 2
      %s28 = sadd.s32 1, %s23
      %p29 = scmp.ge.s32.totalorder %s28, 1
      %s30 = scalar_select %p29, 0, %s28
      %s31 = sadd.s32 1, %s22
      %s32 = scalar_select %p29, %s31, %s22
      %p33 = scmp.ge.s32.totalorder %s32, 2
      %s34 = scalar_select %p33, 0, %s32
      %s35 = sadd.s32 %s22, %s23
      %s36 = sadd.s32 %s34, %s30
      %s37 = ssub.s32 %s35, %s36
      %p38 = scmp.eq.s32.totalorder %s37, 0
      %s40 = sadd.s32 %s39, 1
      %s41 = scalar_select %p38, %s39, %s40
      %p44 = pneg %p38
      %p45 = scmp.eq.s32.totalorder %s15, 1
      %p46 = por %p44, %p45
      %p47 = scmp.ne.s32.totalorder %s39, %s42
      %p48 = scmp.eq.s32.totalorder %s15, 0
      %p49 = por %p47, %p48
      %p50 = scmp.ne.s32.totalorder %s39, %s42
      %p51 = scmp.eq.s32.totalorder %s20, 1
      %p52 = por %p50, %p51
      %p53 = scmp.ne.s32.totalorder %s42, %s43
      %p54 = scmp.eq.s32.totalorder %s20, 0
      %p55 = por %p53, %p54
      %p56 = scmp.ne.s32.totalorder %s42, %s43
      %p57 = scmp.eq.s32.totalorder %s21, 1
      %p58 = por %p56, %p57
      %p60 = scmp.ne.s32.totalorder %s43, %s59
      %p61 = scmp.eq.s32.totalorder %s21, 0
      %p62 = por %p60, %p61
      %s64 = sadd.s32 %s63, 1
      %p67 = scmp.eq.s32.totalorder %s15, 1
      %p68 = scmp.ne.s32.totalorder %s63, %s65
      %p69 = scmp.eq.s32.totalorder %s15, 0
      %p70 = por %p68, %p69
      %p71 = scmp.ne.s32.totalorder %s63, %s65
      %p72 = scmp.eq.s32.totalorder %s20, 1
      %p73 = por %p71, %p72
      %p74 = scmp.ne.s32.totalorder %s65, %s66
      %p75 = scmp.eq.s32.totalorder %s20, 0
      %p76 = por %p74, %p75
      %p77 = scmp.ne.s32.totalorder %s65, %s66
      %p78 = scmp.eq.s32.totalorder %s21, 1
      %p79 = por %p77, %p78
      %p81 = scmp.ne.s32.totalorder %s66, %s80
      %p82 = scmp.eq.s32.totalorder %s21, 0
      %p83 = por %p81, %p82
      %s85 = sadd.s32 %s84, 1
      %p88 = scmp.eq.s32.totalorder %s15, 1
      %p89 = scmp.ne.s32.totalorder %s84, %s86
      %p90 = scmp.eq.s32.totalorder %s15, 0
      %p91 = por %p89, %p90
      %p92 = scmp.ne.s32.totalorder %s84, %s86
      %p93 = scmp.eq.s32.totalorder %s20, 1
      %p94 = por %p92, %p93
      %p95 = scmp.ne.s32.totalorder %s86, %s87
      %p96 = scmp.eq.s32.totalorder %s20, 0
      %p97 = por %p95, %p96
      %p98 = scmp.ne.s32.totalorder %s86, %s87
      %p99 = scmp.eq.s32.totalorder %s21, 1
      %p100 = por %p98, %p99
      %p102 = scmp.ne.s32.totalorder %s87, %s101
      %p103 = scmp.eq.s32.totalorder %s21, 0
      %p104 = por %p102, %p103
      %s106 = sadd.s32 %s105, 1
      %p109 = scmp.eq.s32.totalorder %s15, 1
      %p110 = scmp.ne.s32.totalorder %s105, %s107
      %p111 = scmp.eq.s32.totalorder %s15, 0
      %p112 = por %p110, %p111
      %p113 = scmp.ne.s32.totalorder %s105, %s107
      %p114 = scmp.eq.s32.totalorder %s20, 1
      %p115 = por %p113, %p114
      %p116 = scmp.ne.s32.totalorder %s107, %s108
      %p117 = scmp.eq.s32.totalorder %s20, 0
      %p118 = por %p116, %p117
      %p119 = scmp.ne.s32.totalorder %s107, %s108
      %p120 = scmp.eq.s32.totalorder %s21, 1
      %p121 = por %p119, %p120
      %p123 = scmp.ne.s32.totalorder %s108, %s122
      %p124 = scmp.eq.s32.totalorder %s21, 0
      %p125 = por %p123, %p124
      %s127 = sadd.s32 %s126, 1
      %p130 = scmp.eq.s32.totalorder %s15, 1
      %p131 = scmp.ne.s32.totalorder %s126, %s128
      %p132 = scmp.eq.s32.totalorder %s15, 0
      %p133 = por %p131, %p132
      %p134 = scmp.ne.s32.totalorder %s126, %s128
      %p135 = scmp.eq.s32.totalorder %s20, 1
      %p136 = por %p134, %p135
      %p137 = scmp.ne.s32.totalorder %s128, %s129
      %p138 = scmp.eq.s32.totalorder %s20, 0
      %p139 = por %p137, %p138
      %p140 = scmp.ne.s32.totalorder %s128, %s129
      %p141 = scmp.eq.s32.totalorder %s21, 1
      %p142 = por %p140, %p141
      %p144 = scmp.ne.s32.totalorder %s129, %s143
      %p145 = scmp.eq.s32.totalorder %s21, 0
      %p146 = por %p144, %p145
      %s148 = sadd.s32 %s147, 1
      %p151 = scmp.eq.s32.totalorder %s15, 1
      %p152 = scmp.ne.s32.totalorder %s147, %s149
      %p153 = scmp.eq.s32.totalorder %s15, 0
      %p154 = por %p152, %p153
      %p155 = scmp.ne.s32.totalorder %s147, %s149
      %p156 = scmp.eq.s32.totalorder %s20, 1
      %p157 = por %p155, %p156
      %p158 = scmp.ne.s32.totalorder %s149, %s150
      %p159 = scmp.eq.s32.totalorder %s20, 0
      %p160 = por %p158, %p159
      %p161 = scmp.ne.s32.totalorder %s149, %s150
      %p162 = scmp.eq.s32.totalorder %s21, 1
      %p163 = por %p161, %p162
      %p165 = scmp.ne.s32.totalorder %s150, %s164
      %p166 = scmp.eq.s32.totalorder %s21, 0
      %p167 = por %p165, %p166
      %s168 = ssub.s32 %s22, %s34
      %p169 = scmp.eq.s32.totalorder %s168, 0
      %s171 = sadd.s32 %s170, 1
      %s172 = scalar_select %p169, %s170, %s171
      %p175 = pneg %p169
      %p176 = scmp.eq.s32.totalorder %s15, 1
      %p177 = por %p175, %p176
      %p178 = scmp.ne.s32.totalorder %s170, %s173
      %p179 = scmp.eq.s32.totalorder %s15, 0
      %p180 = por %p178, %p179
      %p181 = scmp.ne.s32.totalorder %s170, %s173
      %p182 = scmp.eq.s32.totalorder %s20, 1
      %p183 = por %p181, %p182
      %p184 = scmp.ne.s32.totalorder %s173, %s174
      %p185 = scmp.eq.s32.totalorder %s20, 0
      %p186 = por %p184, %p185
      %p187 = scmp.ne.s32.totalorder %s173, %s174
      %p188 = scmp.eq.s32.totalorder %s21, 1
      %p189 = por %p187, %p188
      %p191 = scmp.ne.s32.totalorder %s174, %s190
      %p192 = scmp.eq.s32.totalorder %s21, 0
      %p193 = por %p191, %p192
      %p194 = scmp.le.s32.totalorder 1, %s15
      %p195 = scmp.lt.s32.totalorder %s15, 3
      %p196 = pnand %p194, %p195
      %p197 = pneg %p196
      // Predicated region
      $region9: #{tpu_custom_call.1} parent=5 // pred_check
        _
      $region10: #{tpu_custom_call.1} parent=5 // pred_check_branch
        %199 = sbr.rel (%p196) target = $region12
      $region11: #{tpu_custom_call.1} parent=5 // pred_region
        %s200 = ssub.s32 %s15, 1
        // Predicated region
        $region13: #{tpu_custom_call.1} parent=11 // pred_check
          %p201 = pneg %p76
        $region14: #{tpu_custom_call.1} parent=11 // pred_check_branch
          %203 = sbr.rel (%p201) target = $region16
        $region15: #{tpu_custom_call.1} parent=11 // pred_region
          _
        $region16: #{tpu_custom_call.1} parent=11 // pred_fallthru
          _
        // Predicated region
        $region17: #{tpu_custom_call.1} parent=11 // pred_check
          %p204 = pneg %p97
        $region18: #{tpu_custom_call.1} parent=11 // pred_check_branch
          %206 = sbr.rel (%p204) target = $region20
        $region19: #{tpu_custom_call.1} parent=11 // pred_region
          _
        $region20: #{tpu_custom_call.1} parent=11 // pred_fallthru
          _
        // Predicated region
        $region21: #{tpu_custom_call.1} parent=11 // pred_check
          %p207 = pneg %p118
        $region22: #{tpu_custom_call.1} parent=11 // pred_check_branch
          %209 = sbr.rel (%p207) target = $region24
        $region23: #{tpu_custom_call.1} parent=11 // pred_region
          _
        $region24: #{tpu_custom_call.1} parent=11 // pred_fallthru
          _
        // Predicated region
        $region25: #{tpu_custom_call.1} parent=11 // pred_check
          %p210 = pneg %p139
        $region26: #{tpu_custom_call.1} parent=11 // pred_check_branch
          %212 = sbr.rel (%p210) target = $region28
        $region27: #{tpu_custom_call.1} parent=11 // pred_region
          _
        $region28: #{tpu_custom_call.1} parent=11 // pred_fallthru
          _
        // Predicated region
        $region29: #{tpu_custom_call.1} parent=11 // pred_check
          %p213 = pneg %p160
        $region30: #{tpu_custom_call.1} parent=11 // pred_check_branch
          %215 = sbr.rel (%p213) target = $region32
        $region31: #{tpu_custom_call.1} parent=11 // pred_region
          _
        $region32: #{tpu_custom_call.1} parent=11 // pred_fallthru
          _
      $region12: #{tpu_custom_call.1} parent=5 // pred_fallthru
        _
      %p216 = scmp.lt.s32.totalorder %s15, 2
      // Predicated region
      $region33: #{tpu_custom_call.1} parent=5 // pred_check
        %p217 = pneg %p216
      $region34: #{tpu_custom_call.1} parent=5 // pred_check_branch
        %219 = sbr.rel (%p217) target = $region36
      $region35: #{tpu_custom_call.1} parent=5 // pred_region
        // Predicated region
        $region37: #{tpu_custom_call.1} parent=35 // pred_check
          %p220 = pneg %p49
        $region38: #{tpu_custom_call.1} parent=35 // pred_check_branch
          %222 = sbr.rel (%p220) target = $region40
        $region39: #{tpu_custom_call.1} parent=35 // pred_region
          %s223 = sadd.s32 %s22, %s23
          %s224 = smul.u32 2, %s223
          %p225 = scmp.lt.s32.totalorder %s224, 3
          %s226 = scalar_select %p225, %s224, 3
          %s227 = smul.addr %s226, 8
          %s228 = scalar_lea.vmem %s0, %s227
          %s229 = sadd.s32 %s22, %s23
          %s230 = smul.u32 2, %s229
        $region40: #{tpu_custom_call.1} parent=35 // pred_fallthru
          _
      $region36: #{tpu_custom_call.1} parent=5 // pred_fallthru
        _
      %p231 = scmp.le.s32.totalorder 1, %s15
      %p232 = scmp.lt.s32.totalorder %s15, 3
      %p233 = pnand %p231, %p232
      %p234 = pneg %p233
      // Predicated region
      $region41: #{tpu_custom_call.1} parent=5 // pred_check
        _
      $region42: #{tpu_custom_call.1} parent=5 // pred_check_branch
        %236 = sbr.rel (%p233) target = $region44
      $region43: #{tpu_custom_call.1} parent=5 // pred_region
        %s237 = ssub.s32 %s15, 1
        %s238 = sadd.s32 %s24, %s25
        %s239 = smul.u32 2, %s238
        %p240 = scmp.lt.s32.totalorder %s239, 3
        %s241 = scalar_select %p240, %s239, 3
        %s242 = smul.addr %s241, 8
        %s243 = scalar_lea.vmem %s0, %s242
        %p244 = pneg %p55
        %p245 = pneg %p52
        %p246 = pneg %p76
        %p247 = pneg %p73
        %p248 = pneg %p97
        %p249 = pneg %p94
        %p250 = pneg %p118
        %p251 = pneg %p115
        %p252 = pneg %p139
        %p253 = pneg %p136
        %p254 = pneg %p160
        %p255 = pneg %p157
        %p256 = pneg %p186
        %p257 = pneg %p183
        %s258 = sand.u32 %s173, 1
        %s259 = scalar_lea.sflag [#allocation6], %s258
        %s260 = sand.u32 %s173, 1
        %s261 = smul.addr %s260, 8
        %s262 = scalar_lea.vmem [#allocation5], %s261
        %s263 = sadd.s32 %s24, %s25
        %s264 = smul.u32 2, %s263
        %p265 = scmp.lt.s32.totalorder %s264, 3
        %s266 = scalar_select %p265, %s264, 3
        %s267 = smul.addr %s266, 8
        %s268 = scalar_lea.vmem %s0, %s267
        %s269 = sadd.s32 %s24, %s25
        %s270 = smul.u32 2, %s269
        %p271 = scmp.eq.s32.totalorder %s25, 0
        // Predicated region
        $region45: #{tpu_custom_call.1} parent=43 // pred_check
          %p272 = pneg %p271
        $region46: #{tpu_custom_call.1} parent=43 // pred_check_branch
          %274 = sbr.rel (%p272) target = $region48
        $region47: #{tpu_custom_call.1} parent=43 // pred_region
          %vm275 = vcmask 7168
          %276 = vst.msk [vmem:[#allocation2] sm:$0xff] %vm275, -1e+30
          %277 = vst.msk [vmem:[#allocation2 + $0x8] sm:$0xff] %vm275, -1e+30
          %278 = vst.msk [vmem:[#allocation3] sm:$0xff] %vm275, 0.0
          %279 = vst.msk [vmem:[#allocation3 + $0x8] sm:$0xff] %vm275, 0.0
          %vm280 = vcmask 64512
          %281 = vst.msk [vmem:[#allocation4] sm:$0xff] %vm280, 0.0
          %282 = vst.msk [vmem:[#allocation4 + $0x8] sm:$0xff] %vm280, 0.0
        $region48: #{tpu_custom_call.1} parent=43 // pred_fallthru
          _
        %v283 = vld [vmem:[%s268] sm:$0xff]
        %v284 = vld [vmem:[%s268 + $0x8] sm:$0xff]
        %v285 = vld [vmem:[%s1] sm:$0xff]
        %v286 = vld [vmem:[%s1 + $0x8] sm:$0xff]
        %vm287 = vcmask 130048
        %v289 = vsel %vm287, %v285, 0
        %v292 = vsel %vm287, %v286, 0
        %v295 = vsel %vm287, %v283, 0
        %v298 = vsel %vm287, %v284, 0
        %300 = vmatprep.subr.mxu0 0.0
        %301 = vmatpush1.xpose.msra.mxu0 %v295
        %302 = vmatprep.subr.mxu0 0.0
        %303 = vmatpush1.xpose.msra.mxu0 %v298
        %304 = vmatprep.subr.mxu0 0.0
        %305 = vmatpush1.xpose.msra.mxu0 0.0
        %306 = vmatprep.subr.mxu0 0.0
        %307 = vmatpush1.xpose.msra.mxu0 0.0
        %308 = vmatprep.subr.mxu0 0.0
        %309 = vmatpush1.xpose.msra.mxu0 0.0
        %310 = vmatprep.subr.mxu0 0.0
        %311 = vmatpush1.xpose.msra.mxu0 0.0
        %312 = vmatprep.subr.mxu0 0.0
        %313 = vmatpush1.xpose.msra.mxu0 0.0
        %314 = vmatprep.subr.mxu0 0.0
        %315 = vmatpush1.xpose.msra.mxu0 0.0
        %316 = vmatprep.subr.mxu0 0.0
        %317 = vmatpush1.xpose.msra.mxu0 0.0
        %318 = vmatprep.subr.mxu0 0.0
        %319 = vmatpush1.xpose.msra.mxu0 0.0
        %320 = vmatprep.subr.mxu0 0.0
        %321 = vmatpush1.xpose.msra.mxu0 0.0
        %322 = vmatprep.subr.mxu0 0.0
        %323 = vmatpush1.xpose.msra.mxu0 0.0
        %324 = vmatprep.subr.mxu0 0.0
        %325 = vmatpush1.xpose.msra.mxu0 0.0
        %326 = vmatprep.subr.mxu0 0.0
        %327 = vmatpush1.xpose.msra.mxu0 0.0
        %328 = vmatprep.subr.mxu0 0.0
        %329 = vmatpush1.xpose.msra.mxu0 0.0
        %330 = vmatprep.subr.mxu0 0.0
        %331 = vmatpush1.xpose.msra.mxu0 0.0
        %332 = vmatprep.subr.mxu0 0.0
        %333 = vmatpush1.xpose.msra.mxu0 0.0
        %334 = vmatprep.subr.mxu0 0.0
        %335 = vmatpush1.xpose.msra.mxu0 0.0
        %336 = vmatprep.subr.mxu0 0.0
        %337 = vmatpush1.xpose.msra.mxu0 0.0
        %338 = vmatprep.subr.mxu0 0.0
        %339 = vmatpush1.xpose.msra.mxu0 0.0
        %340 = vmatprep.subr.mxu0 0.0
        %341 = vmatpush1.xpose.msra.mxu0 0.0
        %342 = vmatprep.subr.mxu0 0.0
        %343 = vmatpush1.xpose.msra.mxu0 0.0
        %344 = vmatprep.subr.mxu0 0.0
        %345 = vmatpush1.xpose.msra.mxu0 0.0
        %346 = vmatprep.subr.mxu0 0.0
        %347 = vmatpush1.xpose.msra.mxu0 0.0
        %348 = vmatprep.subr.mxu0 0.0
        %349 = vmatpush1.xpose.msra.mxu0 0.0
        %350 = vmatprep.subr.mxu0 0.0
        %351 = vmatpush1.xpose.msra.mxu0 0.0
        %352 = vmatprep.subr.mxu0 0.0
        %353 = vmatpush1.xpose.msra.mxu0 0.0
        %354 = vmatprep.subr.mxu0 0.0
        %355 = vmatpush1.xpose.msra.mxu0 0.0
        %356 = vmatprep.subr.mxu0 0.0
        %357 = vmatpush1.xpose.msra.mxu0 0.0
        %358 = vmatprep.subr.mxu0 0.0
        %359 = vmatpush1.xpose.msra.mxu0 0.0
        %360 = vmatprep.subr.mxu0 0.0
        %361 = vmatpush1.xpose.msra.mxu0 0.0
        %362 = vmatprep.subr.mxu0 0.0
        %363 = vmatpush1.xpose.msra.mxu0 0.0
        %364 = vmatprep.mubr.f32.mxu0 0.0
        %365 = vmatmul.mubr.f32.gmra.mrb[0].mxu0 %v289
        %v366 = vpop.f32.mrb[0].mxu0
        %v367 = vadd.f32 0.0, %v366
        %v368 = vpop.f32.mrb[0].mxu0
        %369 = vmatprep.mubr.f32.mxu0 0.0
        %370 = vmatmul.mubr.f32.gmra.mrb[0].mxu0 %v292
        %v371 = vpop.f32.mrb[0].mxu0
        %v372 = vadd.f32 0.0, %v371
        %v373 = vpop.f32.mrb[0].mxu0
        %374 = vdwg.mxu0
        %v375 = vld [vmem:[%s2] sm:$0xff]
        %v376 = vld [vmem:[%s2 + $0x8] sm:$0xff]
        %378 = vset.pattern.permute.xlu0 0
        %379 = vperm.xlu0 %378, %v375
        %v380 = vpop.permute.xlu0 %379
        %383 = vset.pattern.permute.xlu0 0
        %384 = vperm.xlu0 %383, %v376
        %v385 = vpop.permute.xlu0 %384
        %v387 = vadd.f32 %v367, %v380
        %v388 = vadd.f32 %v372, %v385
        %s389 = smul.u32 %s25, 16
        %v390 = vlaneseq
        %v391 = vand.u32 %v390, 127
        %v392 = vstv %s389
        %v393 = vadd.s32 %v392, %v391
        %vm394 = vcmp.lt.s32.totalorder %v393, 12
        %v395 = vsel %vm394, 0.0, -1e+30
        %v396 = vadd.f32 %v387, %v395
        %v397 = vadd.f32 %v388, %v395
        %v398 = vld [vmem:[%s3] sm:$0xff]
        %v399 = vld [vmem:[%s3 + $0x8] sm:$0xff]
        %v401 = vsel %vm287, %v398, 0
        %v404 = vsel %vm287, %v399, 0
        %406 = vmatprep.subr.mxu0 0.0
        %407 = vmatpush1.xpose.msra.mxu0 %v295
        %408 = vmatprep.subr.mxu0 0.0
        %409 = vmatpush1.xpose.msra.mxu0 %v298
        %410 = vmatprep.subr.mxu0 0.0
        %411 = vmatpush1.xpose.msra.mxu0 0.0
        %412 = vmatprep.subr.mxu0 0.0
        %413 = vmatpush1.xpose.msra.mxu0 0.0
        %414 = vmatprep.subr.mxu0 0.0
        %415 = vmatpush1.xpose.msra.mxu0 0.0
        %416 = vmatprep.subr.mxu0 0.0
        %417 = vmatpush1.xpose.msra.mxu0 0.0
        %418 = vmatprep.subr.mxu0 0.0
        %419 = vmatpush1.xpose.msra.mxu0 0.0
        %420 = vmatprep.subr.mxu0 0.0
        %421 = vmatpush1.xpose.msra.mxu0 0.0
        %422 = vmatprep.subr.mxu0 0.0
        %423 = vmatpush1.xpose.msra.mxu0 0.0
        %424 = vmatprep.subr.mxu0 0.0
        %425 = vmatpush1.xpose.msra.mxu0 0.0
        %426 = vmatprep.subr.mxu0 0.0
        %427 = vmatpush1.xpose.msra.mxu0 0.0
        %428 = vmatprep.subr.mxu0 0.0
        %429 = vmatpush1.xpose.msra.mxu0 0.0
        %430 = vmatprep.subr.mxu0 0.0
        %431 = vmatpush1.xpose.msra.mxu0 0.0
        %432 = vmatprep.subr.mxu0 0.0
        %433 = vmatpush1.xpose.msra.mxu0 0.0
        %434 = vmatprep.subr.mxu0 0.0
        %435 = vmatpush1.xpose.msra.mxu0 0.0
        %436 = vmatprep.subr.mxu0 0.0
        %437 = vmatpush1.xpose.msra.mxu0 0.0
        %438 = vmatprep.subr.mxu0 0.0
        %439 = vmatpush1.xpose.msra.mxu0 0.0
        %440 = vmatprep.subr.mxu0 0.0
        %441 = vmatpush1.xpose.msra.mxu0 0.0
        %442 = vmatprep.subr.mxu0 0.0
        %443 = vmatpush1.xpose.msra.mxu0 0.0
        %444 = vmatprep.subr.mxu0 0.0
        %445 = vmatpush1.xpose.msra.mxu0 0.0
        %446 = vmatprep.subr.mxu0 0.0
        %447 = vmatpush1.xpose.msra.mxu0 0.0
        %448 = vmatprep.subr.mxu0 0.0
        %449 = vmatpush1.xpose.msra.mxu0 0.0
        %450 = vmatprep.subr.mxu0 0.0
        %451 = vmatpush1.xpose.msra.mxu0 0.0
        %452 = vmatprep.subr.mxu0 0.0
        %453 = vmatpush1.xpose.msra.mxu0 0.0
        %454 = vmatprep.subr.mxu0 0.0
        %455 = vmatpush1.xpose.msra.mxu0 0.0
        %456 = vmatprep.subr.mxu0 0.0
        %457 = vmatpush1.xpose.msra.mxu0 0.0
        %458 = vmatprep.subr.mxu0 0.0
        %459 = vmatpush1.xpose.msra.mxu0 0.0
        %460 = vmatprep.subr.mxu0 0.0
        %461 = vmatpush1.xpose.msra.mxu0 0.0
        %462 = vmatprep.subr.mxu0 0.0
        %463 = vmatpush1.xpose.msra.mxu0 0.0
        %464 = vmatprep.subr.mxu0 0.0
        %465 = vmatpush1.xpose.msra.mxu0 0.0
        %466 = vmatprep.subr.mxu0 0.0
        %467 = vmatpush1.xpose.msra.mxu0 0.0
        %468 = vmatprep.subr.mxu0 0.0
        %469 = vmatpush1.xpose.msra.mxu0 0.0
        %470 = vmatprep.mubr.f32.mxu0 0.0
        %471 = vmatmul.mubr.f32.gmra.mrb[0].mxu0 %v401
        %v472 = vpop.f32.mrb[0].mxu0
        %v473 = vadd.f32 0.0, %v472
        %v474 = vpop.f32.mrb[0].mxu0
        %475 = vmatprep.mubr.f32.mxu0 0.0
        %476 = vmatmul.mubr.f32.gmra.mrb[0].mxu0 %v404
        %v477 = vpop.f32.mrb[0].mxu0
        %v478 = vadd.f32 0.0, %v477
        %v479 = vpop.f32.mrb[0].mxu0
        %480 = vdwg.mxu0
        %v481 = vld [vmem:[#allocation2] sm:$0xff]
        %v482 = vld [vmem:[#allocation2 + $0x8] sm:$0xff]
        %v483 = vsel %vm287, %v396, -inf
        %484 = vmax.xlane.f32.xlu0 %v483
        %v485 = vpop.xlane.xlu0 %484
        %v486 = vsel %vm287, %v397, -inf
        %487 = vmax.xlane.f32.xlu0 %v486
        %v488 = vpop.xlane.xlu0 %487
        %v489 = vmax.f32 %v481, %v485
        %v490 = vmax.f32 %v482, %v488
        %v491 = vsub.f32 %v481, %v489
        %v492 = vsub.f32 %v482, %v490
        %v493 = vmul.f32 %v491, 1.442695
        %v494 = vpow.pop %v493
        %v495 = vmul.f32 %v492, 1.442695
        %v496 = vpow.pop %v495
        %498 = vset.pattern.permute.xlu0 0
        %499 = vperm.xlu0 %498, %v489
        %v500 = vpop.permute.xlu0 %499
        %503 = vset.pattern.permute.xlu0 0
        %504 = vperm.xlu0 %503, %v490
        %v505 = vpop.permute.xlu0 %504
        %v507 = vsub.f32 %v396, %v500
        %v508 = vsub.f32 %v397, %v505
        %v509 = vmul.f32 %v507, 1.442695
        %v510 = vpow.pop %v509
        %v511 = vmul.f32 %v508, 1.442695
        %v512 = vpow.pop %v511
        %v513 = vld [vmem:[#allocation3] sm:$0xff]
        %v514 = vld [vmem:[#allocation3 + $0x8] sm:$0xff]
        %v515 = vmul.f32 %v494, %v513
        %v516 = vmul.f32 %v496, %v514
        %v517 = vsel %vm287, %v510, 0.0
        %518 = vadd.xlane.f32.xlu0 %v517
        %v519 = vpop.xlane.xlu0 %518
        %v520 = vsel %vm287, %v512, 0.0
        %521 = vadd.xlane.f32.xlu0 %v520
        %v522 = vpop.xlane.xlu0 %521
        %v523 = vadd.f32 %v515, %v519
        %v524 = vadd.f32 %v516, %v522
        %vm525 = vcmask 7168
        %526 = vst.msk [vmem:[#allocation3] sm:$0xff] %vm525, %v523
        %527 = vst.msk [vmem:[#allocation3 + $0x8] sm:$0xff] %vm525, %v524
        %v528 = vld [vmem:[#allocation4] sm:$0xff]
        %v529 = vld [vmem:[#allocation4 + $0x8] sm:$0xff]
        %531 = vset.pattern.permute.xlu0 0
        %532 = vperm.xlu0 %531, %v494
        %v533 = vpop.permute.xlu0 %532
        %536 = vset.pattern.permute.xlu0 0
        %537 = vperm.xlu0 %536, %v496
        %v538 = vpop.permute.xlu0 %537
        %v540 = vmul.f32 %v533, %v528
        %v541 = vmul.f32 %v538, %v529
        %v543 = vsel %vm287, %v510, 0
        %v546 = vsel %vm287, %v473, 0
        %548 = vmatprep.subr.mxu0 0.0
        %549 = vmatpush1.xpose.msra.mxu0 %v546
        %550 = vmatprep.subr.mxu0 0.0
        %551 = vmatpush1.xpose.msra.mxu0 0.0
        %552 = vmatprep.subr.mxu0 0.0
        %553 = vmatpush1.xpose.msra.mxu0 0.0
        %554 = vmatprep.subr.mxu0 0.0
        %555 = vmatpush1.xpose.msra.mxu0 0.0
        %556 = vmatprep.subr.mxu0 0.0
        %557 = vmatpush1.xpose.msra.mxu0 0.0
        %558 = vmatprep.subr.mxu0 0.0
        %559 = vmatpush1.xpose.msra.mxu0 0.0
        %560 = vmatprep.subr.mxu0 0.0
        %561 = vmatpush1.xpose.msra.mxu0 0.0
        %562 = vmatprep.subr.mxu0 0.0
        %563 = vmatpush1.xpose.msra.mxu0 0.0
        %564 = vmatprep.subr.mxu0 0.0
        %565 = vmatpush1.xpose.msra.mxu0 0.0
        %566 = vmatprep.subr.mxu0 0.0
        %567 = vmatpush1.xpose.msra.mxu0 0.0
        %568 = vmatprep.subr.mxu0 0.0
        %569 = vmatpush1.xpose.msra.mxu0 0.0
        %570 = vmatprep.subr.mxu0 0.0
        %571 = vmatpush1.xpose.msra.mxu0 0.0
        %572 = vmatprep.subr.mxu0 0.0
        %573 = vmatpush1.xpose.msra.mxu0 0.0
        %574 = vmatprep.subr.mxu0 0.0
        %575 = vmatpush1.xpose.msra.mxu0 0.0
        %576 = vmatprep.subr.mxu0 0.0
        %577 = vmatpush1.xpose.msra.mxu0 0.0
        %578 = vmatprep.subr.mxu0 0.0
        %579 = vmatpush1.xpose.msra.mxu0 0.0
        %580 = vmatprep.subr.mxu0 0.0
        %581 = vmatpush1.xpose.msra.mxu0 0.0
        %582 = vmatprep.subr.mxu0 0.0
        %583 = vmatpush1.xpose.msra.mxu0 0.0
        %584 = vmatprep.subr.mxu0 0.0
        %585 = vmatpush1.xpose.msra.mxu0 0.0
        %586 = vmatprep.subr.mxu0 0.0
        %587 = vmatpush1.xpose.msra.mxu0 0.0
        %588 = vmatprep.subr.mxu0 0.0
        %589 = vmatpush1.xpose.msra.mxu0 0.0
        %590 = vmatprep.subr.mxu0 0.0
        %591 = vmatpush1.xpose.msra.mxu0 0.0
        %592 = vmatprep.subr.mxu0 0.0
        %593 = vmatpush1.xpose.msra.mxu0 0.0
        %594 = vmatprep.subr.mxu0 0.0
        %595 = vmatpush1.xpose.msra.mxu0 0.0
        %596 = vmatprep.subr.mxu0 0.0
        %597 = vmatpush1.xpose.msra.mxu0 0.0
        %598 = vmatprep.subr.mxu0 0.0
        %599 = vmatpush1.xpose.msra.mxu0 0.0
        %600 = vmatprep.subr.mxu0 0.0
        %601 = vmatpush1.xpose.msra.mxu0 0.0
        %602 = vmatprep.subr.mxu0 0.0
        %603 = vmatpush1.xpose.msra.mxu0 0.0
        %604 = vmatprep.subr.mxu0 0.0
        %605 = vmatpush1.xpose.msra.mxu0 0.0
        %606 = vmatprep.subr.mxu0 0.0
        %607 = vmatpush1.xpose.msra.mxu0 0.0
        %608 = vmatprep.subr.mxu0 0.0
        %609 = vmatpush1.xpose.msra.mxu0 0.0
        %610 = vmatprep.subr.mxu0 0.0
        %611 = vmatpush1.xpose.msra.mxu0 0.0
        %612 = vmatprep.mubr.f32.mxu0 0.0
        %613 = vmatmul.mubr.f32.gmra.mrb[0].mxu0 %v543
        %v614 = vpop.f32.mrb[0].mxu0
        %v615 = vadd.f32 0.0, %v614
        %v616 = vpop.f32.mrb[0].mxu0
        %617 = vdwg.mxu0
        %v619 = vsel %vm287, %v512, 0
        %v622 = vsel %vm287, %v478, 0
        %624 = vmatprep.subr.mxu0 0.0
        %625 = vmatpush1.xpose.msra.mxu0 %v622
        %626 = vmatprep.subr.mxu0 0.0
        %627 = vmatpush1.xpose.msra.mxu0 0.0
        %628 = vmatprep.subr.mxu0 0.0
        %629 = vmatpush1.xpose.msra.mxu0 0.0
        %630 = vmatprep.subr.mxu0 0.0
        %631 = vmatpush1.xpose.msra.mxu0 0.0
        %632 = vmatprep.subr.mxu0 0.0
        %633 = vmatpush1.xpose.msra.mxu0 0.0
        %634 = vmatprep.subr.mxu0 0.0
        %635 = vmatpush1.xpose.msra.mxu0 0.0
        %636 = vmatprep.subr.mxu0 0.0
        %637 = vmatpush1.xpose.msra.mxu0 0.0
        %638 = vmatprep.subr.mxu0 0.0
        %639 = vmatpush1.xpose.msra.mxu0 0.0
        %640 = vmatprep.subr.mxu0 0.0
        %641 = vmatpush1.xpose.msra.mxu0 0.0
        %642 = vmatprep.subr.mxu0 0.0
        %643 = vmatpush1.xpose.msra.mxu0 0.0
        %644 = vmatprep.subr.mxu0 0.0
        %645 = vmatpush1.xpose.msra.mxu0 0.0
        %646 = vmatprep.subr.mxu0 0.0
        %647 = vmatpush1.xpose.msra.mxu0 0.0
        %648 = vmatprep.subr.mxu0 0.0
        %649 = vmatpush1.xpose.msra.mxu0 0.0
        %650 = vmatprep.subr.mxu0 0.0
        %651 = vmatpush1.xpose.msra.mxu0 0.0
        %652 = vmatprep.subr.mxu0 0.0
        %653 = vmatpush1.xpose.msra.mxu0 0.0
        %654 = vmatprep.subr.mxu0 0.0
        %655 = vmatpush1.xpose.msra.mxu0 0.0
        %656 = vmatprep.subr.mxu0 0.0
        %657 = vmatpush1.xpose.msra.mxu0 0.0
        %658 = vmatprep.subr.mxu0 0.0
        %659 = vmatpush1.xpose.msra.mxu0 0.0
        %660 = vmatprep.subr.mxu0 0.0
        %661 = vmatpush1.xpose.msra.mxu0 0.0
        %662 = vmatprep.subr.mxu0 0.0
        %663 = vmatpush1.xpose.msra.mxu0 0.0
        %664 = vmatprep.subr.mxu0 0.0
        %665 = vmatpush1.xpose.msra.mxu0 0.0
        %666 = vmatprep.subr.mxu0 0.0
        %667 = vmatpush1.xpose.msra.mxu0 0.0
        %668 = vmatprep.subr.mxu0 0.0
        %669 = vmatpush1.xpose.msra.mxu0 0.0
        %670 = vmatprep.subr.mxu0 0.0
        %671 = vmatpush1.xpose.msra.mxu0 0.0
        %672 = vmatprep.subr.mxu0 0.0
        %673 = vmatpush1.xpose.msra.mxu0 0.0
        %674 = vmatprep.subr.mxu0 0.0
        %675 = vmatpush1.xpose.msra.mxu0 0.0
        %676 = vmatprep.subr.mxu0 0.0
        %677 = vmatpush1.xpose.msra.mxu0 0.0
        %678 = vmatprep.subr.mxu0 0.0
        %679 = vmatpush1.xpose.msra.mxu0 0.0
        %680 = vmatprep.subr.mxu0 0.0
        %681 = vmatpush1.xpose.msra.mxu0 0.0
        %682 = vmatprep.subr.mxu0 0.0
        %683 = vmatpush1.xpose.msra.mxu0 0.0
        %684 = vmatprep.subr.mxu0 0.0
        %685 = vmatpush1.xpose.msra.mxu0 0.0
        %686 = vmatprep.subr.mxu0 0.0
        %687 = vmatpush1.xpose.msra.mxu0 0.0
        %688 = vmatprep.mubr.f32.mxu0 0.0
        %689 = vmatmul.mubr.f32.gmra.mrb[0].mxu0 %v619
        %v690 = vpop.f32.mrb[0].mxu0
        %v691 = vadd.f32 0.0, %v690
        %v692 = vpop.f32.mrb[0].mxu0
        %693 = vdwg.mxu0
        %v694 = vadd.f32 %v540, %v615
        %v695 = vadd.f32 %v541, %v691
        %vm696 = vcmask 64512
        %697 = vst.msk [vmem:[#allocation4] sm:$0xff] %vm696, %v694
        %698 = vst.msk [vmem:[#allocation4 + $0x8] sm:$0xff] %vm696, %v695
        %699 = vst.msk [vmem:[#allocation2] sm:$0xff] %vm525, %v489
        %700 = vst.msk [vmem:[#allocation2 + $0x8] sm:$0xff] %vm525, %v490
        // Predicated region
        $region49: #{tpu_custom_call.1} parent=43 // pred_check
          %p701 = pneg %p271
        $region50: #{tpu_custom_call.1} parent=43 // pred_check_branch
          %703 = sbr.rel (%p701) target = $region52
        $region51: #{tpu_custom_call.1} parent=43 // pred_region
          %v704 = vld [vmem:[#allocation4] sm:$0xff]
          %v705 = vld [vmem:[#allocation4 + $0x8] sm:$0xff]
          %v706 = vld [vmem:[#allocation3] sm:$0xff]
          %v707 = vld [vmem:[#allocation3 + $0x8] sm:$0xff]
          %v708 = vrcp.pop %v706
          %v709 = vrcp.pop %v707
          %711 = vset.pattern.permute.xlu0 0
          %712 = vperm.xlu0 %711, %v708
          %v713 = vpop.permute.xlu0 %712
          %716 = vset.pattern.permute.xlu0 0
          %717 = vperm.xlu0 %716, %v709
          %v718 = vpop.permute.xlu0 %717
          %v720 = vmul.f32 %v704, %v713
          %v721 = vmul.f32 %v705, %v718
          %v722 = vld [vmem:[%s4] sm:$0xff]
          %v723 = vld [vmem:[%s4 + $0x8] sm:$0xff]
          %v725 = vsel %vm696, %v720, 0
          %727 = vmatprep.subr.mxu0 0.0
          %728 = vmatpush1.msra.mxu0 %v722
          %729 = vmatprep.subr.mxu0 0.0
          %730 = vmatpush1.msra.mxu0 0.0
          %731 = vmatprep.subr.mxu0 0.0
          %732 = vmatpush1.msra.mxu0 0.0
          %733 = vmatprep.subr.mxu0 0.0
          %734 = vmatpush1.msra.mxu0 0.0
          %735 = vmatprep.subr.mxu0 0.0
          %736 = vmatpush1.msra.mxu0 0.0
          %737 = vmatprep.subr.mxu0 0.0
          %738 = vmatpush1.msra.mxu0 0.0
          %739 = vmatprep.subr.mxu0 0.0
          %740 = vmatpush1.msra.mxu0 0.0
          %741 = vmatprep.subr.mxu0 0.0
          %742 = vmatpush1.msra.mxu0 0.0
          %743 = vmatprep.subr.mxu0 0.0
          %744 = vmatpush1.msra.mxu0 0.0
          %745 = vmatprep.subr.mxu0 0.0
          %746 = vmatpush1.msra.mxu0 0.0
          %747 = vmatprep.subr.mxu0 0.0
          %748 = vmatpush1.msra.mxu0 0.0
          %749 = vmatprep.subr.mxu0 0.0
          %750 = vmatpush1.msra.mxu0 0.0
          %751 = vmatprep.subr.mxu0 0.0
          %752 = vmatpush1.msra.mxu0 0.0
          %753 = vmatprep.subr.mxu0 0.0
          %754 = vmatpush1.msra.mxu0 0.0
          %755 = vmatprep.subr.mxu0 0.0
          %756 = vmatpush1.msra.mxu0 0.0
          %757 = vmatprep.subr.mxu0 0.0
          %758 = vmatpush1.msra.mxu0 0.0
          %759 = vmatprep.subr.mxu0 0.0
          %760 = vmatpush1.msra.mxu0 0.0
          %761 = vmatprep.subr.mxu0 0.0
          %762 = vmatpush1.msra.mxu0 0.0
          %763 = vmatprep.subr.mxu0 0.0
          %764 = vmatpush1.msra.mxu0 0.0
          %765 = vmatprep.subr.mxu0 0.0
          %766 = vmatpush1.msra.mxu0 0.0
          %767 = vmatprep.subr.mxu0 0.0
          %768 = vmatpush1.msra.mxu0 0.0
          %769 = vmatprep.subr.mxu0 0.0
          %770 = vmatpush1.msra.mxu0 0.0
          %771 = vmatprep.subr.mxu0 0.0
          %772 = vmatpush1.msra.mxu0 0.0
          %773 = vmatprep.subr.mxu0 0.0
          %774 = vmatpush1.msra.mxu0 0.0
          %775 = vmatprep.subr.mxu0 0.0
          %776 = vmatpush1.msra.mxu0 0.0
          %777 = vmatprep.subr.mxu0 0.0
          %778 = vmatpush1.msra.mxu0 0.0
          %779 = vmatprep.subr.mxu0 0.0
          %780 = vmatpush1.msra.mxu0 0.0
          %781 = vmatprep.subr.mxu0 0.0
          %782 = vmatpush1.msra.mxu0 0.0
          %783 = vmatprep.subr.mxu0 0.0
          %784 = vmatpush1.msra.mxu0 0.0
          %785 = vmatprep.subr.mxu0 0.0
          %786 = vmatpush1.msra.mxu0 0.0
          %787 = vmatprep.subr.mxu0 0.0
          %788 = vmatpush1.msra.mxu0 0.0
          %789 = vmatprep.subr.mxu0 0.0
          %790 = vmatpush1.msra.mxu0 0.0
          %791 = vmatprep.mubr.f32.mxu0 0.0
          %792 = vmatmul.mubr.f32.gmra.mrb[0].mxu0 %v725
          %v793 = vpop.f32.mrb[0].mxu0
          %v794 = vadd.f32 0.0, %v793
          %v795 = vpop.f32.mrb[0].mxu0
          %796 = vdwg.mxu0
          %v798 = vsel %vm696, %v721, 0
          %800 = vmatprep.subr.mxu0 0.0
          %801 = vmatpush1.msra.mxu0 %v723
          %802 = vmatprep.subr.mxu0 0.0
          %803 = vmatpush1.msra.mxu0 0.0
          %804 = vmatprep.subr.mxu0 0.0
          %805 = vmatpush1.msra.mxu0 0.0
          %806 = vmatprep.subr.mxu0 0.0
          %807 = vmatpush1.msra.mxu0 0.0
          %808 = vmatprep.subr.mxu0 0.0
          %809 = vmatpush1.msra.mxu0 0.0
          %810 = vmatprep.subr.mxu0 0.0
          %811 = vmatpush1.msra.mxu0 0.0
          %812 = vmatprep.subr.mxu0 0.0
          %813 = vmatpush1.msra.mxu0 0.0
          %814 = vmatprep.subr.mxu0 0.0
          %815 = vmatpush1.msra.mxu0 0.0
          %816 = vmatprep.subr.mxu0 0.0
          %817 = vmatpush1.msra.mxu0 0.0
          %818 = vmatprep.subr.mxu0 0.0
          %819 = vmatpush1.msra.mxu0 0.0
          %820 = vmatprep.subr.mxu0 0.0
          %821 = vmatpush1.msra.mxu0 0.0
          %822 = vmatprep.subr.mxu0 0.0
          %823 = vmatpush1.msra.mxu0 0.0
          %824 = vmatprep.subr.mxu0 0.0
          %825 = vmatpush1.msra.mxu0 0.0
          %826 = vmatprep.subr.mxu0 0.0
          %827 = vmatpush1.msra.mxu0 0.0
          %828 = vmatprep.subr.mxu0 0.0
          %829 = vmatpush1.msra.mxu0 0.0
          %830 = vmatprep.subr.mxu0 0.0
          %831 = vmatpush1.msra.mxu0 0.0
          %832 = vmatprep.subr.mxu0 0.0
          %833 = vmatpush1.msra.mxu0 0.0
          %834 = vmatprep.subr.mxu0 0.0
          %835 = vmatpush1.msra.mxu0 0.0
          %836 = vmatprep.subr.mxu0 0.0
          %837 = vmatpush1.msra.mxu0 0.0
          %838 = vmatprep.subr.mxu0 0.0
          %839 = vmatpush1.msra.mxu0 0.0
          %840 = vmatprep.subr.mxu0 0.0
          %841 = vmatpush1.msra.mxu0 0.0
          %842 = vmatprep.subr.mxu0 0.0
          %843 = vmatpush1.msra.mxu0 0.0
          %844 = vmatprep.subr.mxu0 0.0
          %845 = vmatpush1.msra.mxu0 0.0
          %846 = vmatprep.subr.mxu0 0.0
          %847 = vmatpush1.msra.mxu0 0.0
          %848 = vmatprep.subr.mxu0 0.0
          %849 = vmatpush1.msra.mxu0 0.0
          %850 = vmatprep.subr.mxu0 0.0
          %851 = vmatpush1.msra.mxu0 0.0
          %852 = vmatprep.subr.mxu0 0.0
          %853 = vmatpush1.msra.mxu0 0.0
          %854 = vmatprep.subr.mxu0 0.0
          %855 = vmatpush1.msra.mxu0 0.0
          %856 = vmatprep.subr.mxu0 0.0
          %857 = vmatpush1.msra.mxu0 0.0
          %858 = vmatprep.subr.mxu0 0.0
          %859 = vmatpush1.msra.mxu0 0.0
          %860 = vmatprep.subr.mxu0 0.0
          %861 = vmatpush1.msra.mxu0 0.0
          %862 = vmatprep.subr.mxu0 0.0
          %863 = vmatpush1.msra.mxu0 0.0
          %864 = vmatprep.mubr.f32.mxu0 0.0
          %865 = vmatmul.mubr.f32.gmra.mrb[0].mxu0 %v798
          %v866 = vpop.f32.mrb[0].mxu0
          %v867 = vadd.f32 0.0, %v866
          %v868 = vpop.f32.mrb[0].mxu0
          %869 = vdwg.mxu0
          %v870 = vsel %vm287, %v794, 0.0
          %v871 = vsel %vm287, %v867, 0.0
          %v872 = vadd.f32 %v870, %v871
          %v873 = vld [vmem:[%s5] sm:$0x1]
          %v875 = vlaneseq
          %v876 = vshrl.u32 %v875, 7
          %v877 = vsub.s32 0, %v876
          %v878 = vrot.slane %v873, %v877
          %v880 = vadd.f32 %v872, %v878
          %881 = vst.msk [vmem:[%s262] sm:$0xff] %vm287, %v880
        $region52: #{tpu_custom_call.1} parent=43 // pred_fallthru
          _
        %s882 = sand.u32 %s173, 1
        %s883 = scalar_lea.sflag [#allocation6], %s882
        %s884 = sand.u32 %s173, 1
        %s885 = smul.addr %s884, 8
        %s886 = scalar_lea.vmem [#allocation5], %s885
        // Predicated region
        $region53: #{tpu_custom_call.1} parent=43 // pred_check
          %p887 = pneg %p183
        $region54: #{tpu_custom_call.1} parent=43 // pred_check_branch
          %889 = sbr.rel (%p887) target = $region56
        $region55: #{tpu_custom_call.1} parent=43 // pred_region
          %s891 = ssub.s32 128, 128
          %892 = vsyncadd %s883, %s891
          %s893 = smul.addr %s24, 128
          %s894 = scalar_lea.hbm %s6, %s893
          %s896 = sshll.u32 %s886, 4
          %s897 = int_to_ptr.vmem [resolvable:$true] %s896
          %899 = dma.vmem_to_hbm [thread:$0]  %s897, 128, %s894, %s883
        $region56: #{tpu_custom_call.1} parent=43 // pred_fallthru
          _
      $region44: #{tpu_custom_call.1} parent=5 // pred_fallthru
        _
      %p900 = scmp.le.s32.totalorder 2, %s15
      // Predicated region
      $region57: #{tpu_custom_call.1} parent=5 // pred_check
        %p901 = pneg %p900
      $region58: #{tpu_custom_call.1} parent=5 // pred_check_branch
        %903 = sbr.rel (%p901) target = $region60
      $region59: #{tpu_custom_call.1} parent=5 // pred_region
        %s904 = ssub.s32 %s15, 2
        // Predicated region
        $region61: #{tpu_custom_call.1} parent=59 // pred_check
          %p905 = pneg %p189
        $region62: #{tpu_custom_call.1} parent=59 // pred_check_branch
          %907 = sbr.rel (%p905) target = $region64
        $region63: #{tpu_custom_call.1} parent=59 // pred_region
          %s908 = sand.u32 %s174, 1
          %s909 = scalar_lea.sflag [#allocation6], %s908
          %s910 = sand.u32 %s174, 1
          %s911 = smul.addr %s910, 8
          %s912 = scalar_lea.vmem [#allocation5], %s911
          %913 = dma.done %s909, 128
        $region64: #{tpu_custom_call.1} parent=59 // pred_fallthru
          _
      $region60: #{tpu_custom_call.1} parent=5 // pred_fallthru
        _
    $region6: #{tpu_custom_call.1} parent=1 // loop_footer
      %s19 = sadd.s32 1, %s15
    $region7: #{tpu_custom_call.1} parent=1 // loop_footer_branch
      %14 = sbr.rel target = $region3
    $region8: #{tpu_custom_call.1} parent=1 // loop_exit
      _
    %914 = vsyncpa [#allocation6], 1
    %s915 = scalar_lea.sflag [#allocation6], 1
    %916 = vsyncpa %s915, 1

</llo_original>
